<compile_context>
chip_gen: v5e
topology: v5e:2x2
jax: 0.10.0
libtpu: 0.0.40
codegen_flags: <defaults>
</compile_context>

<pallas_src>
import functools

import jax
import jax.numpy as jnp
import numpy as np
from jax.experimental import pallas as pl
from jax.experimental.pallas import tpu as pltpu


def _conv_block_kernel(x_ref, w1_ref, b1_ref, w2_ref, b2_ref, o_ref,
                       h1_ref, h2_ref, *, b_blk, k_size, pool_size):
    """One batch block (b_blk elements), both conv stages fused.

    x_ref : (b_blk, L1_out, K*C_in)  stage-1 im2col rows (built in the wrapper)
    w1_ref: (K*C_in, C1)             im2col weight, stage 1
    b1_ref: (1, C1)
    w2_ref: (K*C1, C2)               im2col weight, stage 2
    b2_ref: (1, C2)
    o_ref : (b_blk, L2_pool, C2)     lane-dense NLC output
    h1_ref: (b_blk*L1_out, C1) f32   VMEM scratch (stage-1 conv+ReLU, pre-pool)
    h2_ref: (b_blk*L2_out, C2) f32   VMEM scratch (stage-2 conv+ReLU, pre-pool)
    """
    l1_out = x_ref.shape[1]
    c1 = w1_ref.shape[1]
    c2 = w2_ref.shape[1]
    l1_pool = l1_out // pool_size
    l2_out = l1_pool - k_size + 1
    l2_pool = l2_out // pool_size

    # ---- stage 1: ONE MXU matmul over all b_blk elements stacked along M ----
    if b_blk == 1:
        xcol = x_ref[0]                                        # (L1_out, K*C_in)
    else:
        xcol = jnp.concatenate([x_ref[b] for b in range(b_blk)], axis=0)
    h1 = jnp.dot(xcol, w1_ref[...], preferred_element_type=jnp.float32)
    h1_ref[...] = jnp.maximum(h1 + b1_ref[...], 0.0)           # (b_blk*L1_out, C1)

    # ---- stage-1 MaxPool1d: strided sublane reads + elementwise max ----------
    # (l1_out % pool_size == 0, asserted in the wrapper, so pooling windows
    #  never cross batch-element boundaries in the stacked layout.)
    p1 = h1_ref[pl.ds(0, b_blk * l1_pool, pool_size), :]
    for p in range(1, pool_size):
        p1 = jnp.maximum(p1, h1_ref[pl.ds(p, b_blk * l1_pool, pool_size), :])
    # p1: (b_blk*L1_pool, C1)

    # ---- stage 2: per-element im2col (static slices) + ONE MXU matmul --------
    hcols = []
    for b in range(b_blk):
        base = b * l1_pool
        hcols.append(jnp.concatenate(
            [p1[base + kk: base + kk + l2_out, :] for kk in range(k_size)],
            axis=1))                                           # (L2_out, K*C1)
    hcol = hcols[0] if b_blk == 1 else jnp.concatenate(hcols, axis=0)
    h2 = jnp.dot(hcol, w2_ref[...], preferred_element_type=jnp.float32)
    h2_ref[...] = jnp.maximum(h2 + b2_ref[...], 0.0)           # (b_blk*L2_out, C2)

    # ---- stage-2 MaxPool1d ----------------------------------------------------
    p2 = h2_ref[pl.ds(0, b_blk * l2_pool, pool_size), :]
    for p in range(1, pool_size):
        p2 = jnp.maximum(p2, h2_ref[pl.ds(p, b_blk * l2_pool, pool_size), :])
    # p2: (b_blk*L2_pool, C2)

    # ---- lane-dense NLC store (32-wide unmasked vst); NLC->NCL is wrapper-side
    for b in range(b_blk):
        o_ref[b] = p2[b * l2_pool:(b + 1) * l2_pool, :].astype(o_ref.dtype)


def prepare_params(params):
    """One-time weight re-layout: torch (C_out, C_in, K) -> im2col (K*C_in, C_out).

    Hoisted out of the forward path so no per-call transposes / reshapes are
    re-materialized around every kernel launch.
    """
    c1, c_in, k = params["w1"].shape
    c2 = params["w2"].shape[0]
    w1_mat = jnp.transpose(params["w1"], (2, 1, 0)).reshape(k * c_in, c1).astype(jnp.float32)
    w2_mat = jnp.transpose(params["w2"], (2, 1, 0)).reshape(k * c1, c2).astype(jnp.float32)
    b1 = params["b1"].reshape(1, c1).astype(jnp.float32)
    b2 = params["b2"].reshape(1, c2).astype(jnp.float32)
    return w1_mat, b1, w2_mat, b2


def conv_block_forward(x_ncl, w1_mat, b1, w2_mat, b2, *,
                       pool_size=2, batch_block=None):
    """Equivalent of ConvBlock.forward.  x_ncl: (N, C_in, L) -> (N, C2, L_out)."""
    n, c_in, l_in = x_ncl.shape
    k = w1_mat.shape[0] // c_in
    c1 = w1_mat.shape[1]
    c2 = w2_mat.shape[1]

    l1_out = l_in - k + 1
    # TODO(synk): support floor-mode pool remainders (l_out % pool != 0) via
    # per-element masking; not needed for the module's default shapes.
    assert l1_out % pool_size == 0, "stage-1 length must divide pool_size"
    l1_pool = l1_out // pool_size
    l2_out = l1_pool - k + 1
    assert l2_out % pool_size == 0, "stage-2 length must divide pool_size"
    l2_pool = l2_out // pool_size

    # Batch blocking: coarse grid (default ~2 steps so v7x's two TensorCores
    # each take one step; on v5e/v6e the win is simply fewer, fatter steps).
    if batch_block is None:
        batch_block = max(1, min(8, -(-n // 2)))
    num_blocks = -(-n // batch_block)
    n_pad = num_blocks * batch_block

    # ---- wrapper-side layout plumbing (cheap XLA ops, keeps the kernel clean):
    # NCL -> NLC, zero-pad batch to a multiple of batch_block, im2col gather.
    x_nlc = jnp.transpose(x_ncl, (0, 2, 1)).astype(jnp.float32)   # (N, L, C_in)
    if n_pad != n:
        x_nlc = jnp.pad(x_nlc, ((0, n_pad - n), (0, 0), (0, 0)))
    xcol = jnp.concatenate([x_nlc[:, i:i + l1_out, :] for i in range(k)],
                           axis=2)                                # (n_pad, L1_out, K*C_in)

    kernel = functools.partial(_conv_block_kernel, b_blk=batch_block,
                               k_size=k, pool_size=pool_size)

    out_nlc = pl.pallas_call(
        kernel,
        out_shape=jax.ShapeDtypeStruct((n_pad, l2_pool, c2), x_ncl.dtype),
        grid=(num_blocks,),
        in_specs=[
            pl.BlockSpec((batch_block, l1_out, k * c_in), lambda g: (g, 0, 0)),
            pl.BlockSpec((k * c_in, c1), lambda g: (0, 0)),
            pl.BlockSpec((1, c1), lambda g: (0, 0)),
            pl.BlockSpec((k * c1, c2), lambda g: (0, 0)),
            pl.BlockSpec((1, c2), lambda g: (0, 0)),
        ],
        out_specs=pl.BlockSpec((batch_block, l2_pool, c2), lambda g: (g, 0, 0)),
        scratch_shapes=[
            pltpu.VMEM((batch_block * l1_out, c1), jnp.float32),
            pltpu.VMEM((batch_block * l2_out, c2), jnp.float32),
        ],
        # Per-step VMEM is tiny (<~10 KiB per batch element), far below the
        # 32 MiB scoped default on all of v5e/v6e/v7x — no vmem_limit needed.
        compiler_params=pltpu.CompilerParams(
            dimension_semantics=("parallel",)),
    )(xcol, w1_mat, b1, w2_mat, b2)

    # NLC -> NCL (free layout plumbing in the wrapper), drop batch padding.
    return jnp.transpose(out_nlc[:n], (0, 2, 1))


def init_params(key, in_channels=4, c1_filters=16, c2_filters=32, kernel_size=5):
    """Deterministic init mimicking PyTorch Conv1d default (uniform +-1/sqrt(fan_in))."""
    k1, k2, k3, k4 = jax.random.split(key, 4)
    bound1 = 1.0 / np.sqrt(in_channels * kernel_size)
    bound2 = 1.0 / np.sqrt(c1_filters * kernel_size)
    return {
        "w1": jax.random.uniform(k1, (c1_filters, in_channels, kernel_size),
                                 jnp.float32, -bound1, bound1),
        "b1": jax.random.uniform(k2, (c1_filters,), jnp.float32, -bound1, bound1),
        "w2": jax.random.uniform(k3, (c2_filters, c1_filters, kernel_size),
                                 jnp.float32, -bound2, bound2),
        "b2": jax.random.uniform(k4, (c2_filters,), jnp.float32, -bound2, bound2),
    }


def reference_forward(x_ncl, params, *, pool_size=2):
    """Pure-JAX reference (matches torch semantics) for correctness checking."""
    def stage(x, w, b):
        y = jax.lax.conv_general_dilated(
            x, w, window_strides=(1,), padding="VALID",
            dimension_numbers=("NCH", "OIH", "NCH"),
            precision=jax.lax.Precision.HIGHEST)
        y = jnp.maximum(y + b[None, :, None], 0.0)
        return jax.lax.reduce_window(y, -jnp.inf, jax.lax.max,
                                     (1, 1, pool_size), (1, 1, pool_size), "VALID")
    x = stage(x_ncl, params["w1"], params["b1"])
    x = stage(x, params["w2"], params["b2"])
    return x


if __name__ == "__main__":
    key = jax.random.PRNGKey(0)
    kp, kx = jax.random.split(key)

    params = init_params(kp)
    w1_mat, b1, w2_mat, b2 = prepare_params(params)   # one-time weight re-layout

    # Small input consistent with the module: batch=2, in_channels=4, length=64.
    x = jax.random.normal(kx, (2, 4, 64), jnp.float32)

    fwd = jax.jit(conv_block_forward, static_argnames=("pool_size", "batch_block"))
    out = fwd(x, w1_mat, b1, w2_mat, b2)
    out = jax.block_until_ready(out)

    ref = reference_forward(x, params)
    assert out.shape == ref.shape == (2, 32, 13), (out.shape, ref.shape)
    np.testing.assert_allclose(np.asarray(out), np.asarray(ref), rtol=2e-3, atol=2e-3)

    print("KERNEL_OK")
</pallas_src>

<mosaic_0001>
module attributes {stable_mosaic.version = 11 : i64} {
  func.func @_conv_block_kernel(%arg0: i32, %arg1: memref<1x60x20xf32, #tpu.memory_space<vmem>>, %arg2: memref<20x16xf32, #tpu.memory_space<vmem>>, %arg3: memref<1x16xf32, #tpu.memory_space<vmem>>, %arg4: memref<80x32xf32, #tpu.memory_space<vmem>>, %arg5: memref<1x32xf32, #tpu.memory_space<vmem>>, %arg6: memref<1x13x32xf32, #tpu.memory_space<vmem>>, %arg7: memref<60x16xf32, #tpu.memory_space<vmem>>, %arg8: memref<26x32xf32, #tpu.memory_space<vmem>>) attributes {dimension_semantics = [#tpu.dimension_semantics<parallel>], iteration_bounds = array<i64: 2>, scalar_prefetch = 0 : i64, scratch_operands = 2 : i64, tpu.core_type = #tpu.core_type<tc>, window_params = [{transform_indices = @transform_0, window_bounds = array<i64: 1, 60, 20>}, {pipeline_mode = #tpu.pipeline_mode<synchronous>, transform_indices = @transform_1, window_bounds = array<i64: 20, 16>}, {pipeline_mode = #tpu.pipeline_mode<synchronous>, transform_indices = @transform_2, window_bounds = array<i64: 1, 16>}, {pipeline_mode = #tpu.pipeline_mode<synchronous>, transform_indices = @transform_3, window_bounds = array<i64: 80, 32>}, {pipeline_mode = #tpu.pipeline_mode<synchronous>, transform_indices = @transform_4, window_bounds = array<i64: 1, 32>}, {transform_indices = @transform_5, window_bounds = array<i64: 1, 13, 32>}]} {
    %c0 = arith.constant 0 : index
    %c0_0 = arith.constant 0 : index
    %c0_1 = arith.constant 0 : index
    %0 = vector.load %arg1[%c0, %c0_0, %c0_1] : memref<1x60x20xf32, #tpu.memory_space<vmem>>, vector<1x60x20xf32>
    %1 = vector.shape_cast %0 : vector<1x60x20xf32> to vector<60x20xf32>
    %c0_2 = arith.constant 0 : index
    %c0_3 = arith.constant 0 : index
    %2 = vector.load %arg2[%c0_2, %c0_3] : memref<20x16xf32, #tpu.memory_space<vmem>>, vector<20x16xf32>
    %cst = arith.constant dense<0.000000e+00> : vector<60x16xf32>
    %3 = tpu.matmul %1, %2, %cst {dimension_numbers = #tpu.dot_dimension_numbers<[1], [0], [0], [1], [0, 0, 1, 1], [], []>} : vector<60x20xf32>, vector<20x16xf32>, vector<60x16xf32> -> vector<60x16xf32>
    %c0_4 = arith.constant 0 : index
    %c0_5 = arith.constant 0 : index
    %4 = vector.load %arg3[%c0_4, %c0_5] : memref<1x16xf32, #tpu.memory_space<vmem>>, vector<1x16xf32>
    %5 = vector.broadcast %4 : vector<1x16xf32> to vector<60x16xf32>
    %6 = arith.addf %3, %5 : vector<60x16xf32>
    %cst_6 = arith.constant 0.000000e+00 : f32
    %7 = vector.broadcast %cst_6 : f32 to vector<60x16xf32>
    %8 = arith.maximumf %6, %7 : vector<60x16xf32>
    %c0_7 = arith.constant 0 : index
    %c0_8 = arith.constant 0 : index
    %9 = vector.load %arg7[%c0_7, %c0_8] : memref<60x16xf32, #tpu.memory_space<vmem>>, vector<60x16xf32>
    tpu.vector_store %arg7[%c0_7, %c0_8], %8 {strides = array<i32>} : memref<60x16xf32, #tpu.memory_space<vmem>>, vector<60x16xf32>,
    %c0_9 = arith.constant 0 : index
    %c0_10 = arith.constant 0 : index
    %10 = tpu.strided_load %arg7[%c0_9, %c0_10] {strides = array<i32: 2, 1>} : memref<60x16xf32, #tpu.memory_space<vmem>>, vector<30x16xf32>
    %c1 = arith.constant 1 : index
    %c0_11 = arith.constant 0 : index
    %11 = tpu.strided_load %arg7[%c1, %c0_11] {strides = array<i32: 2, 1>} : memref<60x16xf32, #tpu.memory_space<vmem>>, vector<30x16xf32>
    %12 = arith.maximumf %10, %11 : vector<30x16xf32>
    %13 = vector.extract_strided_slice %12 {offsets = [0, 0], sizes = [26, 16], strides = [1, 1]} : vector<30x16xf32> to vector<26x16xf32>
    %14 = vector.extract_strided_slice %12 {offsets = [1, 0], sizes = [26, 16], strides = [1, 1]} : vector<30x16xf32> to vector<26x16xf32>
    %15 = vector.extract_strided_slice %12 {offsets = [2, 0], sizes = [26, 16], strides = [1, 1]} : vector<30x16xf32> to vector<26x16xf32>
    %16 = vector.extract_strided_slice %12 {offsets = [3, 0], sizes = [26, 16], strides = [1, 1]} : vector<30x16xf32> to vector<26x16xf32>
    %17 = vector.extract_strided_slice %12 {offsets = [4, 0], sizes = [26, 16], strides = [1, 1]} : vector<30x16xf32> to vector<26x16xf32>
    %18 = tpu.concatenate %13, %14, %15, %16, %17 in 1 : vector<26x16xf32>, vector<26x16xf32>, vector<26x16xf32>, vector<26x16xf32>, vector<26x16xf32> -> vector<26x80xf32>
    %c0_12 = arith.constant 0 : index
    %c0_13 = arith.constant 0 : index
    %19 = vector.load %arg4[%c0_12, %c0_13] : memref<80x32xf32, #tpu.memory_space<vmem>>, vector<80x32xf32>
    %cst_14 = arith.constant dense<0.000000e+00> : vector<26x32xf32>
    %20 = tpu.matmul %18, %19, %cst_14 {dimension_numbers = #tpu.dot_dimension_numbers<[1], [0], [0], [1], [0, 0, 1, 1], [], []>} : vector<26x80xf32>, vector<80x32xf32>, vector<26x32xf32> -> vector<26x32xf32>
    %c0_15 = arith.constant 0 : index
    %c0_16 = arith.constant 0 : index
    %21 = vector.load %arg5[%c0_15, %c0_16] : memref<1x32xf32, #tpu.memory_space<vmem>>, vector<1x32xf32>
    %22 = vector.broadcast %21 : vector<1x32xf32> to vector<26x32xf32>
    %23 = arith.addf %20, %22 : vector<26x32xf32>
    %cst_17 = arith.constant 0.000000e+00 : f32
    %24 = vector.broadcast %cst_17 : f32 to vector<26x32xf32>
    %25 = arith.maximumf %23, %24 : vector<26x32xf32>
    %c0_18 = arith.constant 0 : index
    %c0_19 = arith.constant 0 : index
    %26 = vector.load %arg8[%c0_18, %c0_19] : memref<26x32xf32, #tpu.memory_space<vmem>>, vector<26x32xf32>
    tpu.vector_store %arg8[%c0_18, %c0_19], %25 {strides = array<i32>} : memref<26x32xf32, #tpu.memory_space<vmem>>, vector<26x32xf32>,
    %c0_20 = arith.constant 0 : index
    %c0_21 = arith.constant 0 : index
    %27 = tpu.strided_load %arg8[%c0_20, %c0_21] {strides = array<i32: 2, 1>} : memref<26x32xf32, #tpu.memory_space<vmem>>, vector<13x32xf32>
    %c1_22 = arith.constant 1 : index
    %c0_23 = arith.constant 0 : index
    %28 = tpu.strided_load %arg8[%c1_22, %c0_23] {strides = array<i32: 2, 1>} : memref<26x32xf32, #tpu.memory_space<vmem>>, vector<13x32xf32>
    %29 = arith.maximumf %27, %28 : vector<13x32xf32>
    %c0_24 = arith.constant 0 : index
    %c0_25 = arith.constant 0 : index
    %c0_26 = arith.constant 0 : index
    %30 = vector.load %arg6[%c0_24, %c0_25, %c0_26] : memref<1x13x32xf32, #tpu.memory_space<vmem>>, vector<1x13x32xf32>
    %31 = vector.shape_cast %30 : vector<1x13x32xf32> to vector<13x32xf32>
    %32 = vector.shape_cast %29 : vector<13x32xf32> to vector<1x13x32xf32>
    tpu.vector_store %arg6[%c0_24, %c0_25, %c0_26], %32 {strides = array<i32>} : memref<1x13x32xf32, #tpu.memory_space<vmem>>, vector<1x13x32xf32>,
    return
  }
  func.func @transform_0(%arg0: i32) -> (i32, i32, i32) {
    %c0_i32 = arith.constant 0 : i32
    %c0_i32_0 = arith.constant 0 : i32
    %c0_i32_1 = arith.constant 0 : i32
    return %arg0, %c0_i32, %c0_i32_0 : i32, i32, i32
  }
  func.func @transform_1(%arg0: i32) -> (i32, i32) {
    %c0_i32 = arith.constant 0 : i32
    %c0_i32_0 = arith.constant 0 : i32
    %c0_i32_1 = arith.constant 0 : i32
    return %c0_i32, %c0_i32_0 : i32, i32
  }
  func.func @transform_2(%arg0: i32) -> (i32, i32) {
    %c0_i32 = arith.constant 0 : i32
    %c0_i32_0 = arith.constant 0 : i32
    %c0_i32_1 = arith.constant 0 : i32
    return %c0_i32, %c0_i32_0 : i32, i32
  }
  func.func @transform_3(%arg0: i32) -> (i32, i32) {
    %c0_i32 = arith.constant 0 : i32
    %c0_i32_0 = arith.constant 0 : i32
    %c0_i32_1 = arith.constant 0 : i32
    return %c0_i32, %c0_i32_0 : i32, i32
  }
  func.func @transform_4(%arg0: i32) -> (i32, i32) {
    %c0_i32 = arith.constant 0 : i32
    %c0_i32_0 = arith.constant 0 : i32
    %c0_i32_1 = arith.constant 0 : i32
    return %c0_i32, %c0_i32_0 : i32, i32
  }
  func.func @transform_5(%arg0: i32) -> (i32, i32, i32) {
    %c0_i32 = arith.constant 0 : i32
    %c0_i32_0 = arith.constant 0 : i32
    %c0_i32_1 = arith.constant 0 : i32
    return %arg0, %c0_i32, %c0_i32_0 : i32, i32, i32
  }
}

</mosaic_0001>

<llo_original>
// kernel: conv_block_forward.1
$region0: #{conv_block_forward.1}
  #allocation0 [shape = 'u32[]', space=smem, size = 0x4, offset = 0x4, fixed_abs, tag = 'smem constant byte address 0x4 - core index']
  #allocation1 [shape = 'u32[72,128]{1,0:T(1,128)}', space=vmem, size = 0x9000, scoped, tag = 'internal scratch']
  #allocation2 [shape = 'f32[60,16]{1,0:T(8,128)}', space=vmem, size = 0x8000, scoped, tag = 'scratch operand']
  #allocation3 [shape = 'f32[26,32]{1,0:T(8,128)}', space=vmem, size = 0x4000, scoped, tag = 'scratch operand']
  %s0 = inlined_call_operand.vmem [shape: f32[2,60,20], index: 0, kind: input, shape index: {}]
  %s1 = inlined_call_operand.vmem [shape: f32[20,16], index: 1, kind: input, shape index: {}]
  %s2 = inlined_call_operand.vmem [shape: f32[1,16], index: 2, kind: input, shape index: {}]
  %s3 = inlined_call_operand.vmem [shape: f32[80,32], index: 3, kind: input, shape index: {}]
  %s4 = inlined_call_operand.vmem [shape: f32[1,32], index: 4, kind: input, shape index: {}]
  %s5 = inlined_call_operand.vmem [shape: f32[2,13,32], index: 5, kind: output, shape index: {}]
  %s6 = sld [smem:[#allocation0]]
  $region53: #{conv_block_forward.1} parent=0
    _
  %s8 = ssub.s32 1, %s6
  %s9 = scalar_select 0, %s8, %s6
  loop: start=0, step=1, limit=4
  $region2: #{conv_block_forward.1} parent=0 // loop_pre_header
    _
  $region3: #{conv_block_forward.1} parent=0 // loop_header
    %s11 = sphi 0, %s15
    %p12 = scmp.ge.s32.totalorder %s11, 4
    %s21 = sphi 0, %s23
    %s24 = sphi 0, %s21
    %s25 = sphi 0, %s24
    %s41 = sphi 0, %s25
    %s45 = sphi 0, %s45
    %s47 = sphi 0, %s45
    %s48 = sphi 0, %s47
    %s62 = sphi 0, %s48
    %s66 = sphi 0, %s66
    %s68 = sphi 0, %s66
    %s69 = sphi 0, %s68
    %s83 = sphi 0, %s69
    %s87 = sphi 0, %s87
    %s89 = sphi 0, %s87
    %s90 = sphi 0, %s89
    %s104 = sphi 0, %s90
    %s108 = sphi 0, %s108
    %s110 = sphi 0, %s108
    %s111 = sphi 0, %s110
    %s125 = sphi 0, %s111
    %s131 = sphi 0, %s133
    %s134 = sphi 0, %s131
    %s135 = sphi 0, %s134
    %s151 = sphi 0, %s135
  $region4: #{conv_block_forward.1} parent=0 // loop_header_branch
    %14 = sbr.rel (%p12) target = $region8
  $region5: #{conv_block_forward.1} parent=0 // loop_body
    %s16 = ssub.s32 %s11, 1
    %s17 = ssub.s32 %s11, 2
    %s18 = sadd.s32 %s11, 1
    %s19 = ssub.s32 %s11, %s18
    %p20 = scmp.eq.s32.totalorder %s19, 0
    %s22 = sadd.s32 %s21, 1
    %s23 = scalar_select %p20, %s21, %s22
    %p26 = pneg %p20
    %p27 = scmp.eq.s32.totalorder %s11, 1
    %p28 = por %p26, %p27
    %p29 = scmp.ne.s32.totalorder %s21, %s24
    %p30 = scmp.eq.s32.totalorder %s11, 0
    %p31 = por %p29, %p30
    %p32 = scmp.ne.s32.totalorder %s21, %s24
    %p33 = scmp.eq.s32.totalorder %s16, 1
    %p34 = por %p32, %p33
    %p35 = scmp.ne.s32.totalorder %s24, %s25
    %p36 = scmp.eq.s32.totalorder %s16, 0
    %p37 = por %p35, %p36
    %p38 = scmp.ne.s32.totalorder %s24, %s25
    %p39 = scmp.eq.s32.totalorder %s17, 1
    %p40 = por %p38, %p39
    %p42 = scmp.ne.s32.totalorder %s25, %s41
    %p43 = scmp.eq.s32.totalorder %s17, 0
    %p44 = por %p42, %p43
    %s46 = sadd.s32 %s45, 1
    %p49 = scmp.eq.s32.totalorder %s11, 1
    %p50 = scmp.ne.s32.totalorder %s45, %s47
    %p51 = scmp.eq.s32.totalorder %s11, 0
    %p52 = por %p50, %p51
    %p53 = scmp.ne.s32.totalorder %s45, %s47
    %p54 = scmp.eq.s32.totalorder %s16, 1
    %p55 = por %p53, %p54
    %p56 = scmp.ne.s32.totalorder %s47, %s48
    %p57 = scmp.eq.s32.totalorder %s16, 0
    %p58 = por %p56, %p57
    %p59 = scmp.ne.s32.totalorder %s47, %s48
    %p60 = scmp.eq.s32.totalorder %s17, 1
    %p61 = por %p59, %p60
    %p63 = scmp.ne.s32.totalorder %s48, %s62
    %p64 = scmp.eq.s32.totalorder %s17, 0
    %p65 = por %p63, %p64
    %s67 = sadd.s32 %s66, 1
    %p70 = scmp.eq.s32.totalorder %s11, 1
    %p71 = scmp.ne.s32.totalorder %s66, %s68
    %p72 = scmp.eq.s32.totalorder %s11, 0
    %p73 = por %p71, %p72
    %p74 = scmp.ne.s32.totalorder %s66, %s68
    %p75 = scmp.eq.s32.totalorder %s16, 1
    %p76 = por %p74, %p75
    %p77 = scmp.ne.s32.totalorder %s68, %s69
    %p78 = scmp.eq.s32.totalorder %s16, 0
    %p79 = por %p77, %p78
    %p80 = scmp.ne.s32.totalorder %s68, %s69
    %p81 = scmp.eq.s32.totalorder %s17, 1
    %p82 = por %p80, %p81
    %p84 = scmp.ne.s32.totalorder %s69, %s83
    %p85 = scmp.eq.s32.totalorder %s17, 0
    %p86 = por %p84, %p85
    %s88 = sadd.s32 %s87, 1
    %p91 = scmp.eq.s32.totalorder %s11, 1
    %p92 = scmp.ne.s32.totalorder %s87, %s89
    %p93 = scmp.eq.s32.totalorder %s11, 0
    %p94 = por %p92, %p93
    %p95 = scmp.ne.s32.totalorder %s87, %s89
    %p96 = scmp.eq.s32.totalorder %s16, 1
    %p97 = por %p95, %p96
    %p98 = scmp.ne.s32.totalorder %s89, %s90
    %p99 = scmp.eq.s32.totalorder %s16, 0
    %p100 = por %p98, %p99
    %p101 = scmp.ne.s32.totalorder %s89, %s90
    %p102 = scmp.eq.s32.totalorder %s17, 1
    %p103 = por %p101, %p102
    %p105 = scmp.ne.s32.totalorder %s90, %s104
    %p106 = scmp.eq.s32.totalorder %s17, 0
    %p107 = por %p105, %p106
    %s109 = sadd.s32 %s108, 1
    %p112 = scmp.eq.s32.totalorder %s11, 1
    %p113 = scmp.ne.s32.totalorder %s108, %s110
    %p114 = scmp.eq.s32.totalorder %s11, 0
    %p115 = por %p113, %p114
    %p116 = scmp.ne.s32.totalorder %s108, %s110
    %p117 = scmp.eq.s32.totalorder %s16, 1
    %p118 = por %p116, %p117
    %p119 = scmp.ne.s32.totalorder %s110, %s111
    %p120 = scmp.eq.s32.totalorder %s16, 0
    %p121 = por %p119, %p120
    %p122 = scmp.ne.s32.totalorder %s110, %s111
    %p123 = scmp.eq.s32.totalorder %s17, 1
    %p124 = por %p122, %p123
    %p126 = scmp.ne.s32.totalorder %s111, %s125
    %p127 = scmp.eq.s32.totalorder %s17, 0
    %p128 = por %p126, %p127
    %s129 = ssub.s32 %s11, %s18
    %p130 = scmp.eq.s32.totalorder %s129, 0
    %s132 = sadd.s32 %s131, 1
    %s133 = scalar_select %p130, %s131, %s132
    %p136 = pneg %p130
    %p137 = scmp.eq.s32.totalorder %s11, 1
    %p138 = por %p136, %p137
    %p139 = scmp.ne.s32.totalorder %s131, %s134
    %p140 = scmp.eq.s32.totalorder %s11, 0
    %p141 = por %p139, %p140
    %p142 = scmp.ne.s32.totalorder %s131, %s134
    %p143 = scmp.eq.s32.totalorder %s16, 1
    %p144 = por %p142, %p143
    %p145 = scmp.ne.s32.totalorder %s134, %s135
    %p146 = scmp.eq.s32.totalorder %s16, 0
    %p147 = por %p145, %p146
    %p148 = scmp.ne.s32.totalorder %s134, %s135
    %p149 = scmp.eq.s32.totalorder %s17, 1
    %p150 = por %p148, %p149
    %p152 = scmp.ne.s32.totalorder %s135, %s151
    %p153 = scmp.eq.s32.totalorder %s17, 0
    %p154 = por %p152, %p153
    %p155 = scmp.le.s32.totalorder 1, %s11
    %p156 = scmp.lt.s32.totalorder %s11, 3
    %p157 = pnand %p155, %p156
    %p158 = pneg %p157
    // Predicated region
    $region9: #{conv_block_forward.1} parent=5 // pred_check
      _
    $region10: #{conv_block_forward.1} parent=5 // pred_check_branch
      %160 = sbr.rel (%p157) target = $region12
    $region11: #{conv_block_forward.1} parent=5 // pred_region
      %s161 = ssub.s32 %s11, 1
      // Predicated region
      $region13: #{conv_block_forward.1} parent=11 // pred_check
        %p162 = pneg %p58
      $region14: #{conv_block_forward.1} parent=11 // pred_check_branch
        %164 = sbr.rel (%p162) target = $region16
      $region15: #{conv_block_forward.1} parent=11 // pred_region
        _
      $region16: #{conv_block_forward.1} parent=11 // pred_fallthru
        _
      // Predicated region
      $region17: #{conv_block_forward.1} parent=11 // pred_check
        %p165 = pneg %p79
      $region18: #{conv_block_forward.1} parent=11 // pred_check_branch
        %167 = sbr.rel (%p165) target = $region20
      $region19: #{conv_block_forward.1} parent=11 // pred_region
        _
      $region20: #{conv_block_forward.1} parent=11 // pred_fallthru
        _
      // Predicated region
      $region21: #{conv_block_forward.1} parent=11 // pred_check
        %p168 = pneg %p100
      $region22: #{conv_block_forward.1} parent=11 // pred_check_branch
        %170 = sbr.rel (%p168) target = $region24
      $region23: #{conv_block_forward.1} parent=11 // pred_region
        _
      $region24: #{conv_block_forward.1} parent=11 // pred_fallthru
        _
      // Predicated region
      $region25: #{conv_block_forward.1} parent=11 // pred_check
        %p171 = pneg %p121
      $region26: #{conv_block_forward.1} parent=11 // pred_check_branch
        %173 = sbr.rel (%p171) target = $region28
      $region27: #{conv_block_forward.1} parent=11 // pred_region
        _
      $region28: #{conv_block_forward.1} parent=11 // pred_fallthru
        _
    $region12: #{conv_block_forward.1} parent=5 // pred_fallthru
      _
    %p174 = scmp.lt.s32.totalorder %s11, 2
    // Predicated region
    $region29: #{conv_block_forward.1} parent=5 // pred_check
      %p175 = pneg %p174
    $region30: #{conv_block_forward.1} parent=5 // pred_check_branch
      %177 = sbr.rel (%p175) target = $region32
    $region31: #{conv_block_forward.1} parent=5 // pred_region
      // Predicated region
      $region33: #{conv_block_forward.1} parent=31 // pred_check
        %p178 = pneg %p31
      $region34: #{conv_block_forward.1} parent=31 // pred_check_branch
        %180 = sbr.rel (%p178) target = $region36
      $region35: #{conv_block_forward.1} parent=31 // pred_region
        %p181 = scmp.lt.s32.totalorder %s11, 1
        %s182 = scalar_select %p181, %s11, 1
        %s183 = smul.addr %s182, 8
        %s184 = smul.addr %s183, 8
        %s185 = scalar_lea.vmem %s0, %s184
      $region36: #{conv_block_forward.1} parent=31 // pred_fallthru
        _
    $region32: #{conv_block_forward.1} parent=5 // pred_fallthru
      _
    %p186 = scmp.le.s32.totalorder 1, %s11
    %p187 = scmp.lt.s32.totalorder %s11, 3
    %p188 = pnand %p186, %p187
    %p189 = pneg %p188
    // Predicated region
    $region37: #{conv_block_forward.1} parent=5 // pred_check
      _
    $region38: #{conv_block_forward.1} parent=5 // pred_check_branch
      %191 = sbr.rel (%p188) target = $region40
    $region39: #{conv_block_forward.1} parent=5 // pred_region
      %s192 = ssub.s32 %s11, 1
      %p193 = scmp.lt.s32.totalorder %s16, 1
      %s194 = scalar_select %p193, %s16, 1
      %s195 = smul.addr %s194, 8
      %s196 = smul.addr %s195, 8
      %s197 = scalar_lea.vmem %s0, %s196
      %p198 = pneg %p37
      %p199 = pneg %p34
      %p200 = pneg %p58
      %p201 = pneg %p55
      %p202 = pneg %p79
      %p203 = pneg %p76
      %p204 = pneg %p100
      %p205 = pneg %p97
      %p206 = pneg %p121
      %p207 = pneg %p118
      %p208 = pneg %p147
      %p209 = pneg %p144
      %p210 = scmp.lt.s32.totalorder %s16, 1
      %s211 = scalar_select %p210, %s16, 1
      %s212 = smul.addr %s211, 2
      %s213 = smul.addr %s212, 8
      %s214 = scalar_lea.vmem %s5, %s213
      %p215 = scmp.lt.s32.totalorder %s16, 1
      %s216 = scalar_select %p215, %s16, 1
      %s217 = smul.addr %s216, 8
      %s218 = smul.addr %s217, 8
      %s219 = scalar_lea.vmem %s0, %s218
      %p220 = scmp.lt.s32.totalorder %s16, 1
      %s221 = scalar_select %p220, %s16, 1
      %s222 = smul.addr %s221, 2
      %s223 = smul.addr %s222, 8
      %s224 = scalar_lea.vmem %s5, %s223
      %v225 = vld [vmem:[%s219] sm:$0xff]
      %v226 = vld [vmem:[%s219 + $0x8] sm:$0xff]
      %v227 = vld [vmem:[%s219 + $0x10] sm:$0xff]
      %v228 = vld [vmem:[%s219 + $0x18] sm:$0xff]
      %v229 = vld [vmem:[%s219 + $0x20] sm:$0xff]
      %v230 = vld [vmem:[%s219 + $0x28] sm:$0xff]
      %v231 = vld [vmem:[%s219 + $0x30] sm:$0xff]
      %v232 = vld [vmem:[%s219 + $0x38] sm:$0xf]
      %v233 = vld [vmem:[%s1] sm:$0xff]
      %v234 = vld [vmem:[%s1 + $0x8] sm:$0xff]
      %v235 = vld [vmem:[%s1 + $0x10] sm:$0xf]
      %v236 = vld [vmem:[%s2] sm:$0x1]
      %v238 = vperm.slane %v236, 0
      %vm240 = vcmask 162816
      %v242 = vsel %vm240, %v225, 0
      %v245 = vsel %vm240, %v226, 0
      %v248 = vsel %vm240, %v227, 0
      %v251 = vsel %vm240, %v228, 0
      %v254 = vsel %vm240, %v229, 0
      %v257 = vsel %vm240, %v230, 0
      %v260 = vsel %vm240, %v231, 0
      %v263 = vsel %vm240, %v232, 0
      %vm265 = vcmask 1043456
      %v267 = vsel %vm265, %v235, 0
      %269 = vmatpush.msra.mxu0 0.0
      %270 = vmatpush.msra.mxu0 0.0
      %271 = vmatpush.msra.mxu0 0.0
      %272 = vmatpush.msra.mxu0 0.0
      %273 = vmatpush.msra.mxu0 0.0
      %274 = vmatpush.msra.mxu0 0.0
      %275 = vmatpush.msra.mxu0 0.0
      %276 = vmatpush.msra.mxu0 0.0
      %277 = vmatpush.msra.mxu0 0.0
      %278 = vmatpush.msra.mxu0 0.0
      %279 = vmatpush.msra.mxu0 0.0
      %280 = vmatpush.msra.mxu0 0.0
      %281 = vmatpush.msra.mxu0 0.0
      %282 = vmatpush.msra.mxu0 %v267
      %283 = vmatpush.msra.mxu0 %v234
      %284 = vmatpush.msra.mxu0 %v233
      %285 = vmatmul.f32.gmra.mxu0 %v242
      %v286 = vpop.f32.mrf.mxu0
      %v287 = vadd.f32 %v238, %v286
      %288 = vmatmul.f32.gmra.mxu0 %v245
      %v289 = vpop.f32.mrf.mxu0
      %v290 = vadd.f32 %v238, %v289
      %291 = vmatmul.f32.gmra.mxu0 %v248
      %v292 = vpop.f32.mrf.mxu0
      %v293 = vadd.f32 %v238, %v292
      %294 = vmatmul.f32.gmra.mxu0 %v251
      %v295 = vpop.f32.mrf.mxu0
      %v296 = vadd.f32 %v238, %v295
      %297 = vmatmul.f32.gmra.mxu0 %v254
      %v298 = vpop.f32.mrf.mxu0
      %v299 = vadd.f32 %v238, %v298
      %300 = vmatmul.f32.gmra.mxu0 %v257
      %v301 = vpop.f32.mrf.mxu0
      %v302 = vadd.f32 %v238, %v301
      %303 = vmatmul.f32.gmra.mxu0 %v260
      %v304 = vpop.f32.mrf.mxu0
      %v305 = vadd.f32 %v238, %v304
      %306 = vmatmul.f32.gmra.mxu0 %v263
      %v307 = vpop.f32.mrf.mxu0
      %v308 = vadd.f32 %v238, %v307
      %309 = vdwg.mxu0
      %v310 = vmax.f32 %v287, 0.0
      %v311 = vmax.f32 %v290, 0.0
      %v312 = vmax.f32 %v293, 0.0
      %v313 = vmax.f32 %v296, 0.0
      %v314 = vmax.f32 %v299, 0.0
      %v315 = vmax.f32 %v302, 0.0
      %v316 = vmax.f32 %v305, 0.0
      %v317 = vmax.f32 %v308, 0.0
      %vm318 = vcmask 130048
      %319 = vst.msk [vmem:[#allocation2] sm:$0xff] %vm318, %v310
      %320 = vst.msk [vmem:[#allocation2 + $0x8] sm:$0xff] %vm318, %v311
      %321 = vst.msk [vmem:[#allocation2 + $0x10] sm:$0xff] %vm318, %v312
      %322 = vst.msk [vmem:[#allocation2 + $0x18] sm:$0xff] %vm318, %v313
      %323 = vst.msk [vmem:[#allocation2 + $0x20] sm:$0xff] %vm318, %v314
      %324 = vst.msk [vmem:[#allocation2 + $0x28] sm:$0xff] %vm318, %v315
      %325 = vst.msk [vmem:[#allocation2 + $0x30] sm:$0xff] %vm318, %v316
      %vm326 = vcmask 125952
      %327 = vst.msk [vmem:[#allocation2 + $0x38] sm:$0xf] %vm326, %v317
      %v328 = vld [vmem:[#allocation2] ss:$2 sm:$0xff]
      %s329 = scalar_lea.vmem [#allocation2], 16
      %v330 = vld [vmem:[%s329] ss:$2 sm:$0xff]
      %s331 = scalar_lea.vmem [#allocation2], 32
      %v332 = vld [vmem:[%s331] ss:$2 sm:$0xff]
      %s333 = scalar_lea.vmem [#allocation2], 48
      %v334 = vld [vmem:[%s333] ss:$2 sm:$0x3f]
      %s335 = scalar_lea.vmem [#allocation2], 1
      %v336 = vld [vmem:[%s335] ss:$2 sm:$0xff]
      %s337 = scalar_lea.vmem [#allocation2], 17
      %v338 = vld [vmem:[%s337] ss:$2 sm:$0xff]
      %s339 = scalar_lea.vmem [#allocation2], 33
      %v340 = vld [vmem:[%s339] ss:$2 sm:$0xff]
      %s341 = scalar_lea.vmem [#allocation2], 49
      %v342 = vld [vmem:[%s341] ss:$2 sm:$0x3f]
      %v343 = vmax.f32 %v328, %v336
      %v344 = vmax.f32 %v330, %v338
      %v345 = vmax.f32 %v332, %v340
      %v346 = vmax.f32 %v334, %v342
      %vm351 = vcmask 1046528
      %v352 = vrot.slane %v343, 1
      %v353 = vrot.slane %v344, 1
      %v354 = vsel %vm351, %v352, %v353
      %v355 = vrot.slane %v345, 1
      %v356 = vsel %vm351, %v353, %v355
      %v357 = vrot.slane %v346, 1
      %v358 = vsel %vm351, %v355, %v357
      %359 = vrot.lane.b32.xlu0 %v354, 16
      %v360 = vpop.permute.xlu0 %359
      %361 = vrot.lane.b32.xlu0 %v356, 16
      %v362 = vpop.permute.xlu0 %361
      %363 = vrot.lane.b32.xlu0 %v358, 16
      %v364 = vpop.permute.xlu0 %363
      %365 = vrot.lane.b32.xlu0 %v357, 16
      %v366 = vpop.permute.xlu0 %365
      %vm371 = vcmask 1045504
      %v372 = vrot.slane %v343, 2
      %v373 = vrot.slane %v344, 2
      %v374 = vsel %vm371, %v372, %v373
      %v375 = vrot.slane %v345, 2
      %v376 = vsel %vm371, %v373, %v375
      %v377 = vrot.slane %v346, 2
      %v378 = vsel %vm371, %v375, %v377
      %379 = vrot.lane.b32.xlu0 %v374, 32
      %v380 = vpop.permute.xlu0 %379
      %381 = vrot.lane.b32.xlu0 %v376, 32
      %v382 = vpop.permute.xlu0 %381
      %383 = vrot.lane.b32.xlu0 %v378, 32
      %v384 = vpop.permute.xlu0 %383
      %385 = vrot.lane.b32.xlu0 %v377, 32
      %v386 = vpop.permute.xlu0 %385
      %vm391 = vcmask 1044480
      %v392 = vrot.slane %v343, 3
      %v393 = vrot.slane %v344, 3
      %v394 = vsel %vm391, %v392, %v393
      %v395 = vrot.slane %v345, 3
      %v396 = vsel %vm391, %v393, %v395
      %v397 = vrot.slane %v346, 3
      %v398 = vsel %vm391, %v395, %v397
      %399 = vrot.lane.b32.xlu0 %v394, 48
      %v400 = vpop.permute.xlu0 %399
      %401 = vrot.lane.b32.xlu0 %v396, 48
      %v402 = vpop.permute.xlu0 %401
      %403 = vrot.lane.b32.xlu0 %v398, 48
      %v404 = vpop.permute.xlu0 %403
      %405 = vrot.lane.b32.xlu0 %v397, 48
      %v406 = vpop.permute.xlu0 %405
      %v411 = vrot.slane %v343, 4
      %v412 = vrot.slane %v344, 4
      %v413 = vsel %vm265, %v411, %v412
      %v414 = vrot.slane %v345, 4
      %v415 = vsel %vm265, %v412, %v414
      %v416 = vrot.slane %v346, 4
      %v417 = vsel %vm265, %v414, %v416
      %418 = vrot.lane.b32.xlu0 %v413, 64
      %v419 = vpop.permute.xlu0 %418
      %420 = vrot.lane.b32.xlu0 %v415, 64
      %v421 = vpop.permute.xlu0 %420
      %422 = vrot.lane.b32.xlu0 %v417, 64
      %v423 = vpop.permute.xlu0 %422
      %424 = vrot.lane.b32.xlu0 %v416, 64
      %v425 = vpop.permute.xlu0 %424
      %v430 = vsel %vm318, %v343, %v360
      %v431 = vsel %vm318, %v344, %v362
      %v432 = vsel %vm318, %v345, %v364
      %v433 = vsel %vm318, %v346, %v366
      %vm434 = vcmask 261120
      %v435 = vsel %vm434, %v430, %v380
      %v436 = vsel %vm434, %v431, %v382
      %v437 = vsel %vm434, %v432, %v384
      %v438 = vsel %vm434, %v433, %v386
      %vm439 = vcmask 392192
      %v440 = vsel %vm439, %v435, %v400
      %v441 = vsel %vm439, %v436, %v402
      %v442 = vsel %vm439, %v437, %v404
      %v443 = vsel %vm439, %v438, %v406
      %vm444 = vcmask 523264
      %v445 = vsel %vm444, %v440, %v419
      %v446 = vsel %vm444, %v441, %v421
      %v447 = vsel %vm444, %v442, %v423
      %v448 = vsel %vm444, %v443, %v425
      %v449 = vld [vmem:[%s3] sm:$0xff]
      %v450 = vld [vmem:[%s3 + $0x8] sm:$0xff]
      %v451 = vld [vmem:[%s3 + $0x10] sm:$0xff]
      %v452 = vld [vmem:[%s3 + $0x18] sm:$0xff]
      %v453 = vld [vmem:[%s3 + $0x20] sm:$0xff]
      %v454 = vld [vmem:[%s3 + $0x28] sm:$0xff]
      %v455 = vld [vmem:[%s3 + $0x30] sm:$0xff]
      %v456 = vld [vmem:[%s3 + $0x38] sm:$0xff]
      %v457 = vld [vmem:[%s3 + $0x40] sm:$0xff]
      %v458 = vld [vmem:[%s3 + $0x48] sm:$0xff]
      %v459 = vld [vmem:[%s4] sm:$0x1]
      %v461 = vperm.slane %v459, 0
      %vm463 = vcmask 654336
      %v465 = vsel %vm463, %v445, 0
      %v468 = vsel %vm463, %v446, 0
      %v471 = vsel %vm463, %v447, 0
      %v474 = vsel %vm463, %v448, 0
      %476 = vmatpush.msra.mxu0 0.0
      %477 = vmatpush.msra.mxu0 0.0
      %478 = vmatpush.msra.mxu0 0.0
      %479 = vmatpush.msra.mxu0 0.0
      %480 = vmatpush.msra.mxu0 0.0
      %481 = vmatpush.msra.mxu0 0.0
      %482 = vmatpush.msra.mxu0 %v458
      %483 = vmatpush.msra.mxu0 %v457
      %484 = vmatpush.msra.mxu0 %v456
      %485 = vmatpush.msra.mxu0 %v455
      %486 = vmatpush.msra.mxu0 %v454
      %487 = vmatpush.msra.mxu0 %v453
      %488 = vmatpush.msra.mxu0 %v452
      %489 = vmatpush.msra.mxu0 %v451
      %490 = vmatpush.msra.mxu0 %v450
      %491 = vmatpush.msra.mxu0 %v449
      %492 = vmatmul.f32.gmra.mxu0 %v465
      %v493 = vpop.f32.mrf.mxu0
      %v494 = vadd.f32 %v461, %v493
      %495 = vmatmul.f32.gmra.mxu0 %v468
      %v496 = vpop.f32.mrf.mxu0
      %v497 = vadd.f32 %v461, %v496
      %498 = vmatmul.f32.gmra.mxu0 %v471
      %v499 = vpop.f32.mrf.mxu0
      %v500 = vadd.f32 %v461, %v499
      %501 = vmatmul.f32.gmra.mxu0 %v474
      %v502 = vpop.f32.mrf.mxu0
      %v503 = vadd.f32 %v461, %v502
      %504 = vdwg.mxu0
      %v505 = vmax.f32 %v494, 0.0
      %v506 = vmax.f32 %v497, 0.0
      %v507 = vmax.f32 %v500, 0.0
      %v508 = vmax.f32 %v503, 0.0
      %509 = vst.msk [vmem:[#allocation3] sm:$0xff] %vm434, %v505
      %510 = vst.msk [vmem:[#allocation3 + $0x8] sm:$0xff] %vm434, %v506
      %511 = vst.msk [vmem:[#allocation3 + $0x10] sm:$0xff] %vm434, %v507
      %vm512 = vcmask 254976
      %513 = vst.msk [vmem:[#allocation3 + $0x18] sm:$0x3] %vm512, %v508
      %v514 = vld [vmem:[#allocation3] ss:$2 sm:$0xff]
      %s515 = scalar_lea.vmem [#allocation3], 16
      %v516 = vld [vmem:[%s515] ss:$2 sm:$0x1f]
      %s517 = scalar_lea.vmem [#allocation3], 1
      %v518 = vld [vmem:[%s517] ss:$2 sm:$0xff]
      %s519 = scalar_lea.vmem [#allocation3], 17
      %v520 = vld [vmem:[%s519] ss:$2 sm:$0x1f]
      %v521 = vmax.f32 %v514, %v518
      %v522 = vmax.f32 %v516, %v520
      %523 = vst.msk [vmem:[%s224] sm:$0xff] %vm434, %v521
      %vm524 = vcmask 258048
      %525 = vst.msk [vmem:[%s224 + $0x8] sm:$0x1f] %vm524, %v522
      %p526 = scmp.lt.s32.totalorder %s16, 1
      %s527 = scalar_select %p526, %s16, 1
      %s528 = smul.addr %s527, 2
      %s529 = smul.addr %s528, 8
      %s530 = scalar_lea.vmem %s5, %s529
      // Predicated region
      $region41: #{conv_block_forward.1} parent=39 // pred_check
        %p531 = pneg %p144
      $region42: #{conv_block_forward.1} parent=39 // pred_check_branch
        %533 = sbr.rel (%p531) target = $region44
      $region43: #{conv_block_forward.1} parent=39 // pred_region
        _
      $region44: #{conv_block_forward.1} parent=39 // pred_fallthru
        _
    $region40: #{conv_block_forward.1} parent=5 // pred_fallthru
      _
    %p534 = scmp.le.s32.totalorder 2, %s11
    // Predicated region
    $region45: #{conv_block_forward.1} parent=5 // pred_check
      %p535 = pneg %p534
    $region46: #{conv_block_forward.1} parent=5 // pred_check_branch
      %537 = sbr.rel (%p535) target = $region48
    $region47: #{conv_block_forward.1} parent=5 // pred_region
      %s538 = ssub.s32 %s11, 2
      // Predicated region
      $region49: #{conv_block_forward.1} parent=47 // pred_check
        %p539 = pneg %p150
      $region50: #{conv_block_forward.1} parent=47 // pred_check_branch
        %541 = sbr.rel (%p539) target = $region52
      $region51: #{conv_block_forward.1} parent=47 // pred_region
        %p542 = scmp.lt.s32.totalorder %s17, 1
        %s543 = scalar_select %p542, %s17, 1
        %s544 = smul.addr %s543, 2
        %s545 = smul.addr %s544, 8
        %s546 = scalar_lea.vmem %s5, %s545
      $region52: #{conv_block_forward.1} parent=47 // pred_fallthru
        _
    $region48: #{conv_block_forward.1} parent=5 // pred_fallthru
      _
  $region6: #{conv_block_forward.1} parent=0 // loop_footer
    %s15 = sadd.s32 1, %s11
  $region7: #{conv_block_forward.1} parent=0 // loop_footer_branch
    %10 = sbr.rel target = $region3
  $region8: #{conv_block_forward.1} parent=0 // loop_exit
    _

</llo_original>
